<compile_context>
chip_gen: v6e
topology: v6e:2x2x1
jax: 0.10.0
libtpu: 0.0.40
codegen_flags: <defaults>
</compile_context>

<pallas_src>
import jax
import jax.numpy as jnp
from jax.experimental import pallas as pl
from jax.experimental.pallas import tpu as pltpu


def _round_up(x, m):
    return (x + m - 1) // m * m


def _classifier_kernel(z_ref, w1_ref, b1_ref, w2_ref, b2_ref, o_ref):
    # fc1 on the MXU: bf16 operands, f32 accumulation.  (TILE_B, D) @ (D, D).
    h = jnp.dot(
        z_ref[...].astype(jnp.bfloat16),
        w1_ref[...],
        preferred_element_type=jnp.float32,
    )
    # Bias + ReLU on the VPU (f32).
    h = jnp.maximum(h + b1_ref[...], 0.0)

    # fc_out: contract the feature dim of h against the lane-dense (1, D) w2 row.
    # Result is (1, TILE_B) — logits already packed along lanes, so the EUP work
    # below and the store are both lane-dense.
    logit = jax.lax.dot_general(
        w2_ref[...], h,
        dimension_numbers=(((1,), (1,)), ((), ())),
        preferred_element_type=jnp.float32,
    ) + b2_ref[0]

    # Numerically-stable sigmoid (exp argument is always <= 0):
    #   x >= 0: 1 / (1 + exp(-x));   x < 0: exp(x) / (1 + exp(x))
    # exp + approximate reciprocal both ride the otherwise-idle EUP slot.
    e = jnp.exp(-jnp.abs(logit))
    inv = pl.reciprocal(1.0 + e, approx=True)
    sig = jnp.where(logit >= 0.0, inv, e * inv)

    # Lane-dense packed store: one (1, 1, TILE_B) row per grid step.
    o_ref[...] = sig.reshape(o_ref.shape).astype(o_ref.dtype)


def prepare_classifier_params(w1, b1, w2, b2):
    """One-time (per-model) weight prep — keep out of the per-call path.

    w1: (D, D) stored (in, out); b1: (D,); w2: (D, 1); b2: (1,).
    """
    D = w1.shape[0]
    w1_k = w1.astype(jnp.bfloat16)                 # MXU operand (bf16 on all gens)
    b1_k = b1.astype(jnp.float32).reshape(1, D)    # lane-dense bias row
    w2_k = w2.astype(jnp.float32).reshape(1, D)    # lane-dense fc_out row
    b2_k = b2.astype(jnp.float32).reshape(1)       # true scalar -> SMEM
    return w1_k, b1_k, w2_k, b2_k


def gender_classifier_forward(z, w1_k, b1_k, w2_k, b2_k):
    """z: (B, D) f32; prepared params from prepare_classifier_params.

    Returns sigmoid(relu(z @ w1 + b1) @ w2 + b2) with shape (B, 1).
    """
    B, D = z.shape

    # Large batch tile: amortizes the ~0.35 us/step grid overhead and keeps the
    # z DMA near the HBM roofline.  Only the batch axis is ever padded.
    TILE_B = min(512, _round_up(B, 8))
    B_pad = _round_up(B, TILE_B)
    n_b = B_pad // TILE_B

    z_p = z if B_pad == B else jnp.pad(z, ((0, B_pad - B), (0, 0)))

    out_packed = pl.pallas_call(
        _classifier_kernel,
        # Packed lane-dense output: one TILE_B-wide logit row per grid step.
        out_shape=jax.ShapeDtypeStruct((n_b, 1, TILE_B), jnp.float32),
        grid_spec=pltpu.PrefetchScalarGridSpec(
            num_scalar_prefetch=0,
            grid=(n_b,),
            in_specs=[
                # z: one TILE_B batch slice per grid step (double-buffered);
                # feature dim left at the full array extent (no wrapper pad).
                pl.BlockSpec((TILE_B, D), lambda i: (i, 0)),
                # Weights / biases: resident across the batch grid.
                pl.BlockSpec((D, D), lambda i: (0, 0)),
                pl.BlockSpec((1, D), lambda i: (0, 0)),
                pl.BlockSpec((1, D), lambda i: (0, 0)),
                # b2: true scalar in SMEM (no vreg-tile DMA).
                pl.BlockSpec(memory_space=pltpu.MemorySpace.SMEM),
            ],
            out_specs=pl.BlockSpec((1, 1, TILE_B), lambda i: (i, 0, 0)),
        ),
        compiler_params=pltpu.CompilerParams(
            # Batch axis is embarrassingly parallel (v7x 2-TC split candidate).
            dimension_semantics=("parallel",),
        ),
    )(z_p, w1_k, b1_k, w2_k, b2_k)

    # Unpack the lane-dense rows back to a (B, 1) column; drop batch padding.
    return out_packed.reshape(B_pad, 1)[:B]


def reference_forward(z, w1, b1, w2, b2):
    h = jnp.maximum(z @ w1 + b1, 0.0)
    return jax.nn.sigmoid(h @ w2 + b2)


if __name__ == "__main__":
    latent_dim = 32

    key = jax.random.PRNGKey(0)
    kz, k1, k2, k3, k4, kz2 = jax.random.split(key, 6)

    # Deterministic synthetic parameters (PyTorch Linear-style 1/sqrt(fan_in)).
    bound1 = 1.0 / jnp.sqrt(latent_dim)
    w1 = jax.random.uniform(k1, (latent_dim, latent_dim), jnp.float32, -bound1, bound1)
    b1 = jax.random.uniform(k2, (latent_dim,), jnp.float32, -bound1, bound1)
    w2 = jax.random.uniform(k3, (latent_dim, 1), jnp.float32, -bound1, bound1)
    b2 = jax.random.uniform(k4, (1,), jnp.float32, -bound1, bound1)

    params = prepare_classifier_params(w1, b1, w2, b2)

    # Tolerance accounts for bf16 MXU inputs on fc1 and the EUP approximate
    # reciprocal in the sigmoid (both accepted perf trade-offs).
    ATOL = 1e-2

    # Small case (matches the module's typical use: batch=2).
    z = jax.random.normal(kz, (2, latent_dim), dtype=jnp.float32)
    out = jax.block_until_ready(gender_classifier_forward(z, *params))
    ref = reference_forward(z, w1, b1, w2, b2)
    assert out.shape == (2, 1), out.shape
    assert jnp.allclose(out, ref, atol=ATOL, rtol=ATOL), (out, ref)

    # Multi-tile case: exercises batch padding and a grid of more than one step.
    z_big = jax.random.normal(kz2, (600, latent_dim), dtype=jnp.float32)
    out_big = jax.block_until_ready(gender_classifier_forward(z_big, *params))
    ref_big = reference_forward(z_big, w1, b1, w2, b2)
    assert out_big.shape == (600, 1), out_big.shape
    assert jnp.allclose(out_big, ref_big, atol=ATOL, rtol=ATOL), "large-batch mismatch"

    print("KERNEL_OK")
</pallas_src>

<mosaic_0001>
module attributes {stable_mosaic.version = 11 : i64} {
  func.func @_classifier_kernel(%arg0: i32, %arg1: memref<8x32xf32, #tpu.memory_space<vmem>>, %arg2: memref<32x32xbf16, #tpu.memory_space<vmem>>, %arg3: memref<1x32xf32, #tpu.memory_space<vmem>>, %arg4: memref<1x32xf32, #tpu.memory_space<vmem>>, %arg5: memref<1xf32, #tpu.memory_space<smem>>, %arg6: memref<1x1x8xf32, #tpu.memory_space<vmem>>) attributes {dimension_semantics = [#tpu.dimension_semantics<parallel>], iteration_bounds = array<i64: 1>, scalar_prefetch = 0 : i64, scratch_operands = 0 : i64, tpu.core_type = #tpu.core_type<tc>, window_params = [{transform_indices = @transform_0, window_bounds = array<i64: 8, 32>}, {pipeline_mode = #tpu.pipeline_mode<synchronous>, transform_indices = @transform_1, window_bounds = array<i64: 32, 32>}, {pipeline_mode = #tpu.pipeline_mode<synchronous>, transform_indices = @transform_2, window_bounds = array<i64: 1, 32>}, {pipeline_mode = #tpu.pipeline_mode<synchronous>, transform_indices = @transform_3, window_bounds = array<i64: 1, 32>}, {transform_indices = @transform_4, window_bounds = array<i64: 1>}, {transform_indices = @transform_5, window_bounds = array<i64: 1, 1, 8>}]} {
    %c0 = arith.constant 0 : index
    %c0_0 = arith.constant 0 : index
    %0 = vector.load %arg1[%c0, %c0_0] : memref<8x32xf32, #tpu.memory_space<vmem>>, vector<8x32xf32>
    %1 = arith.truncf %0 : vector<8x32xf32> to vector<8x32xbf16>
    %c0_1 = arith.constant 0 : index
    %c0_2 = arith.constant 0 : index
    %2 = vector.load %arg2[%c0_1, %c0_2] : memref<32x32xbf16, #tpu.memory_space<vmem>>, vector<32x32xbf16>
    %cst = arith.constant dense<0.000000e+00> : vector<8x32xf32>
    %3 = tpu.matmul %1, %2, %cst {dimension_numbers = #tpu.dot_dimension_numbers<[1], [0], [0], [1], [0, 0, 1, 1], [], []>} : vector<8x32xbf16>, vector<32x32xbf16>, vector<8x32xf32> -> vector<8x32xf32>
    %c0_3 = arith.constant 0 : index
    %c0_4 = arith.constant 0 : index
    %4 = vector.load %arg3[%c0_3, %c0_4] : memref<1x32xf32, #tpu.memory_space<vmem>>, vector<1x32xf32>
    %5 = vector.broadcast %4 : vector<1x32xf32> to vector<8x32xf32>
    %6 = arith.addf %3, %5 : vector<8x32xf32>
    %cst_5 = arith.constant 0.000000e+00 : f32
    %7 = vector.broadcast %cst_5 : f32 to vector<8x32xf32>
    %8 = arith.maximumf %6, %7 : vector<8x32xf32>
    %c0_6 = arith.constant 0 : index
    %c0_7 = arith.constant 0 : index
    %9 = vector.load %arg4[%c0_6, %c0_7] : memref<1x32xf32, #tpu.memory_space<vmem>>, vector<1x32xf32>
    %cst_8 = arith.constant dense<0.000000e+00> : vector<1x8xf32>
    %10 = tpu.matmul %9, %8, %cst_8 {dimension_numbers = #tpu.dot_dimension_numbers<[1], [1], [0], [0], [0, 0, 1, 0], [], []>} : vector<1x32xf32>, vector<8x32xf32>, vector<1x8xf32> -> vector<1x8xf32>
    %c0_9 = arith.constant 0 : index
    %11 = memref.load %arg5[%c0_9] : memref<1xf32, #tpu.memory_space<smem>>
    %12 = vector.broadcast %11 : f32 to vector<1x8xf32>
    %13 = arith.addf %10, %12 : vector<1x8xf32>
    %14 = math.absf %13 : vector<1x8xf32>
    %cst_10 = arith.constant 0.000000e+00 : f32
    %15 = vector.broadcast %cst_10 : f32 to vector<1x8xf32>
    %16 = arith.subf %15, %14 : vector<1x8xf32>
    %17 = math.exp %16 : vector<1x8xf32>
    %cst_11 = arith.constant 1.000000e+00 : f32
    %18 = vector.broadcast %cst_11 : f32 to vector<1x8xf32>
    %19 = arith.addf %18, %17 : vector<1x8xf32>
    %20 = tpu.reciprocal %19 {approx = true} : vector<1x8xf32> -> vector<1x8xf32>
    %cst_12 = arith.constant 0.000000e+00 : f32
    %21 = vector.broadcast %cst_12 : f32 to vector<1x8xf32>
    %22 = arith.cmpf oge, %13, %21 : vector<1x8xf32>
    %23 = arith.mulf %17, %20 : vector<1x8xf32>
    %24 = arith.select %22, %20, %23 : vector<1x8xi1>, vector<1x8xf32>
    %25 = vector.shape_cast %24 : vector<1x8xf32> to vector<1x1x8xf32>
    %c0_13 = arith.constant 0 : index
    %c0_14 = arith.constant 0 : index
    %c0_15 = arith.constant 0 : index
    %26 = vector.load %arg6[%c0_13, %c0_14, %c0_15] : memref<1x1x8xf32, #tpu.memory_space<vmem>>, vector<1x1x8xf32>
    tpu.vector_store %arg6[%c0_13, %c0_14, %c0_15], %25 {strides = array<i32>} : memref<1x1x8xf32, #tpu.memory_space<vmem>>, vector<1x1x8xf32>,
    return
  }
  func.func @transform_0(%arg0: i32) -> (i32, i32) {
    %c0_i32 = arith.constant 0 : i32
    %c0_i32_0 = arith.constant 0 : i32
    return %arg0, %c0_i32 : i32, i32
  }
  func.func @transform_1(%arg0: i32) -> (i32, i32) {
    %c0_i32 = arith.constant 0 : i32
    %c0_i32_0 = arith.constant 0 : i32
    %c0_i32_1 = arith.constant 0 : i32
    return %c0_i32, %c0_i32_0 : i32, i32
  }
  func.func @transform_2(%arg0: i32) -> (i32, i32) {
    %c0_i32 = arith.constant 0 : i32
    %c0_i32_0 = arith.constant 0 : i32
    %c0_i32_1 = arith.constant 0 : i32
    return %c0_i32, %c0_i32_0 : i32, i32
  }
  func.func @transform_3(%arg0: i32) -> (i32, i32) {
    %c0_i32 = arith.constant 0 : i32
    %c0_i32_0 = arith.constant 0 : i32
    %c0_i32_1 = arith.constant 0 : i32
    return %c0_i32, %c0_i32_0 : i32, i32
  }
  func.func @transform_4(%arg0: i32) -> i32 {
    %c0_i32 = arith.constant 0 : i32
    %c0_i32_0 = arith.constant 0 : i32
    return %c0_i32 : i32
  }
  func.func @transform_5(%arg0: i32) -> (i32, i32, i32) {
    %c0_i32 = arith.constant 0 : i32
    %c0_i32_0 = arith.constant 0 : i32
    %c0_i32_1 = arith.constant 0 : i32
    return %arg0, %c0_i32, %c0_i32_0 : i32, i32, i32
  }
}

</mosaic_0001>

<llo_original>
// kernel: tpu_custom_call.1
$region0: #{tpu_custom_call.1}
  #allocation0 [shape = 'u32[]', space=smem, size = 0x4, offset = 0x4, fixed_abs, tag = 'smem constant byte address 0x4 - core index']
  #allocation1 [shape = 'u32[144,128]{1,0:T(1,128)}', space=vmem, size = 0x12000, scoped, tag = 'internal scratch']
  #allocation2 [shape = 'f32[1]{0:T(128)S(6)}', space=smem, size = 0x200, scoped, tag = 'scoped memory for tpu_custom_call.1']
  %s0 = inlined_call_operand.hbm [shape: f32[8,32], index: 0, kind: input, shape index: {}]
  %s1 = inlined_call_operand.hbm [shape: bf16[32,32], index: 1, kind: input, shape index: {}]
  %s2 = inlined_call_operand.vmem [shape: f32[1,32], index: 2, kind: input, shape index: {}]
  %s3 = inlined_call_operand.vmem [shape: f32[1,32], index: 3, kind: input, shape index: {}]
  %s4 = inlined_call_operand.<no memory space> [shape: f32[1], index: 4, kind: input, shape index: {}]
  %s5 = inlined_call_operand.hbm [shape: f32[1,1,8], index: 5, kind: output, shape index: {}]
  %s6 = sld [smem:[#allocation0]]
  $region38: #{tpu_custom_call.1} parent=0
    _
  %s8 = ssub.s32 1, %s6
  %s9 = scalar_select 0, %s8, %s6
  %10 = sst [smem:[#allocation2]] %s4
  $region1: #{tpu_custom_call.1} parent=0
    #allocation3 [shape = 'u8[4096]{0}', space=vmem, size = 0x1000, scoped, tag = 'input window, operand 0, single buffered']
    #allocation4 [shape = 's32[1]{0}', space=sflag, size = 0x4, scoped, tag = 'scoped memory for tpu_custom_call.1']
    #allocation5 [shape = 's32[1]{0}', space=sflag, size = 0x4, scoped, tag = 'scoped memory for tpu_custom_call.1']
    #allocation6 [shape = 'u8[8192]{0}', space=vmem, size = 0x2000, scoped, tag = 'input window, operand 1, single buffered']
    #allocation7 [shape = 's32[1]{0}', space=sflag, size = 0x4, scoped, tag = 'scoped memory for tpu_custom_call.1']
    #allocation8 [shape = 'u8[512]{0}', space=vmem, size = 0x400, scoped, tag = 'output window, operand 0, single buffered']
    %11 = vsyncpa [#allocation4], 0
    %12 = vsyncpa [#allocation7], 0
    %13 = vsyncpa [#allocation5], 0
    // Predicated region
    $region2: #{tpu_custom_call.1} parent=1 // pred_check
      _
    $region3: #{tpu_custom_call.1} parent=1 // pred_check_branch
      %15 = sbr.rel (0) target = $region5
    $region4: #{tpu_custom_call.1} parent=1 // pred_region
      %s17 = ssub.s32 128, 128
      %18 = vsyncadd [#allocation4], %s17
      %s20 = sshll.u32 [#allocation3], 4
      %s21 = int_to_ptr.vmem [resolvable:$true] %s20
      %23 = dma.hbm_to_vmem [thread:$0]  %s0, 128, %s21, [#allocation4]
    $region5: #{tpu_custom_call.1} parent=1 // pred_fallthru
      _
    // Predicated region
    $region6: #{tpu_custom_call.1} parent=1 // pred_check
      _
    $region7: #{tpu_custom_call.1} parent=1 // pred_check_branch
      %25 = sbr.rel (0) target = $region9
    $region8: #{tpu_custom_call.1} parent=1 // pred_region
      %s27 = ssub.s32 256, 256
      %28 = vsyncadd [#allocation7], %s27
      %s29 = sshll.u32 [#allocation6], 4
      %s30 = int_to_ptr.vmem [resolvable:$true] %s29
      %35 = dma.hbm_to_vmem [thread:$0]  %s1, 256, %s30, [#allocation7], 64, 64, 4
    $region9: #{tpu_custom_call.1} parent=1 // pred_fallthru
      _
    // Predicated region
    $region10: #{tpu_custom_call.1} parent=1 // pred_check
      _
    $region11: #{tpu_custom_call.1} parent=1 // pred_check_branch
      %37 = sbr.rel (0) target = $region13
    $region12: #{tpu_custom_call.1} parent=1 // pred_region
      _
    $region13: #{tpu_custom_call.1} parent=1 // pred_fallthru
      _
    // Predicated region
    $region14: #{tpu_custom_call.1} parent=1 // pred_check
      _
    $region15: #{tpu_custom_call.1} parent=1 // pred_check_branch
      %39 = sbr.rel (0) target = $region17
    $region16: #{tpu_custom_call.1} parent=1 // pred_region
      _
    $region17: #{tpu_custom_call.1} parent=1 // pred_fallthru
      _
    // Predicated region
    $region18: #{tpu_custom_call.1} parent=1 // pred_check
      _
    $region19: #{tpu_custom_call.1} parent=1 // pred_check_branch
      %41 = sbr.rel (0) target = $region21
    $region20: #{tpu_custom_call.1} parent=1 // pred_region
      _
    $region21: #{tpu_custom_call.1} parent=1 // pred_fallthru
      _
    // Predicated region
    $region22: #{tpu_custom_call.1} parent=1 // pred_check
      _
    $region23: #{tpu_custom_call.1} parent=1 // pred_check_branch
      %43 = sbr.rel (0) target = $region25
    $region24: #{tpu_custom_call.1} parent=1 // pred_region
      %44 = dma.done [#allocation4], 128
    $region25: #{tpu_custom_call.1} parent=1 // pred_fallthru
      _
    // Predicated region
    $region26: #{tpu_custom_call.1} parent=1 // pred_check
      _
    $region27: #{tpu_custom_call.1} parent=1 // pred_check_branch
      %46 = sbr.rel (0) target = $region29
    $region28: #{tpu_custom_call.1} parent=1 // pred_region
      %47 = dma.done [#allocation7], 256
    $region29: #{tpu_custom_call.1} parent=1 // pred_fallthru
      _
    %v49 = vld [vmem:[#allocation3] sm:$0xff]
    %v50 = vpack.c.bf16 %v49, %v49
    %v51 = vld [vmem:[#allocation6] sm:$0xf]
    %v52 = vld [vmem:[#allocation6 + $0x4] sm:$0xf]
    %v53 = vld [vmem:[#allocation6 + $0x8] sm:$0xf]
    %v54 = vld [vmem:[#allocation6 + $0xc] sm:$0xf]
    %v55 = vld [vmem:[%s2] sm:$0x1]
    %v57 = vlaneseq
    %v58 = vshrl.u32 %v57, 7
    %v59 = vsub.s32 0, %v58
    %v60 = vrot.slane %v55, %v59
    %v66 = vunpack.c.l.b16 %v51
    %v67 = vunpack.c.l.b16 %v52
    %v68 = vunpack.c.l.b16 %v53
    %v69 = vunpack.c.l.b16 %v54
    %v70 = vpack.c.b16 %v67, %v66
    %v71 = vpack.c.b16 %v69, %v68
    %vm74 = vcmask 261120
    %v76 = vsel %vm74, %v50, 0
    %78 = vmatprep.subr.bf16.mxu0 0
    %79 = vmatpush1.bf16.msra.mxu0 0
    %80 = vmatprep.subr.bf16.mxu0 0
    %81 = vmatpush1.bf16.msra.mxu0 0
    %82 = vmatprep.subr.bf16.mxu0 0
    %83 = vmatpush1.bf16.msra.mxu0 0
    %84 = vmatprep.subr.bf16.mxu0 0
    %85 = vmatpush1.bf16.msra.mxu0 0
    %86 = vmatprep.subr.bf16.mxu0 0
    %87 = vmatpush1.bf16.msra.mxu0 0
    %88 = vmatprep.subr.bf16.mxu0 0
    %89 = vmatpush1.bf16.msra.mxu0 0
    %90 = vmatprep.subr.bf16.mxu0 0
    %91 = vmatpush1.bf16.msra.mxu0 %v71
    %92 = vmatprep.subr.bf16.mxu0 0
    %93 = vmatpush1.bf16.msra.mxu0 %v70
    %94 = vmatprep.subr.bf16.mxu0 0
    %95 = vmatpush2.bf16.msra.mxu0 0
    %96 = vmatprep.subr.bf16.mxu0 0
    %97 = vmatpush2.bf16.msra.mxu0 0
    %98 = vmatprep.subr.bf16.mxu0 0
    %99 = vmatpush2.bf16.msra.mxu0 0
    %100 = vmatprep.subr.bf16.mxu0 0
    %101 = vmatpush2.bf16.msra.mxu0 0
    %102 = vmatprep.subr.bf16.mxu0 0
    %103 = vmatpush2.bf16.msra.mxu0 0
    %104 = vmatprep.subr.bf16.mxu0 0
    %105 = vmatpush2.bf16.msra.mxu0 0
    %106 = vmatprep.subr.bf16.mxu0 0
    %107 = vmatpush2.bf16.msra.mxu0 0
    %108 = vmatprep.subr.bf16.mxu0 0
    %109 = vmatpush2.bf16.msra.mxu0 0
    %110 = vmatprep.mubr.bf16.mxu0 0
    %111 = vmatmul.mubr.bf16.gmra.mxu0 %v76
    %v112 = vpop.f32.mrf.mxu0
    %v113 = vadd.f32 %v60, %v112
    %v114 = vpop.f32.mrf.mxu0
    %v115 = vpop.f32.mrf.mxu0
    %v116 = vpop.f32.mrf.mxu0
    %117 = vdwg.mxu0
    %v118 = vmax.f32 %v113, 0.0
    %v119 = vld [vmem:[%s3] sm:$0x1]
    %s120 = sld [smem:[#allocation2]]
    %v121 = vstv %s120
    %v123 = vsel %vm74, %v119, 0
    %v126 = vsel %vm74, %v118, 0
    %128 = vmatprep.subr.mxu0 0.0
    %129 = vmatpush1.xpose.msra.mxu0 0.0
    %130 = vmatprep.subr.mxu0 0.0
    %131 = vmatpush1.xpose.msra.mxu0 0.0
    %132 = vmatprep.subr.mxu0 0.0
    %133 = vmatpush1.xpose.msra.mxu0 0.0
    %134 = vmatprep.subr.mxu0 0.0
    %135 = vmatpush1.xpose.msra.mxu0 0.0
    %136 = vmatprep.subr.mxu0 0.0
    %137 = vmatpush1.xpose.msra.mxu0 0.0
    %138 = vmatprep.subr.mxu0 0.0
    %139 = vmatpush1.xpose.msra.mxu0 0.0
    %140 = vmatprep.subr.mxu0 0.0
    %141 = vmatpush1.xpose.msra.mxu0 0.0
    %142 = vmatprep.subr.mxu0 0.0
    %143 = vmatpush1.xpose.msra.mxu0 0.0
    %144 = vmatprep.subr.mxu0 0.0
    %145 = vmatpush1.xpose.msra.mxu0 0.0
    %146 = vmatprep.subr.mxu0 0.0
    %147 = vmatpush1.xpose.msra.mxu0 0.0
    %148 = vmatprep.subr.mxu0 0.0
    %149 = vmatpush1.xpose.msra.mxu0 0.0
    %150 = vmatprep.subr.mxu0 0.0
    %151 = vmatpush1.xpose.msra.mxu0 0.0
    %152 = vmatprep.subr.mxu0 0.0
    %153 = vmatpush1.xpose.msra.mxu0 0.0
    %154 = vmatprep.subr.mxu0 0.0
    %155 = vmatpush1.xpose.msra.mxu0 0.0
    %156 = vmatprep.subr.mxu0 0.0
    %157 = vmatpush1.xpose.msra.mxu0 0.0
    %158 = vmatprep.subr.mxu0 0.0
    %159 = vmatpush1.xpose.msra.mxu0 %v126
    %160 = vmatprep.subr.mxu0 0.0
    %161 = vmatpush2.xpose.msra.mxu0 0.0
    %162 = vmatprep.subr.mxu0 0.0
    %163 = vmatpush2.xpose.msra.mxu0 0.0
    %164 = vmatprep.subr.mxu0 0.0
    %165 = vmatpush2.xpose.msra.mxu0 0.0
    %166 = vmatprep.subr.mxu0 0.0
    %167 = vmatpush2.xpose.msra.mxu0 0.0
    %168 = vmatprep.subr.mxu0 0.0
    %169 = vmatpush2.xpose.msra.mxu0 0.0
    %170 = vmatprep.subr.mxu0 0.0
    %171 = vmatpush2.xpose.msra.mxu0 0.0
    %172 = vmatprep.subr.mxu0 0.0
    %173 = vmatpush2.xpose.msra.mxu0 0.0
    %174 = vmatprep.subr.mxu0 0.0
    %175 = vmatpush2.xpose.msra.mxu0 0.0
    %176 = vmatprep.subr.mxu0 0.0
    %177 = vmatpush2.xpose.msra.mxu0 0.0
    %178 = vmatprep.subr.mxu0 0.0
    %179 = vmatpush2.xpose.msra.mxu0 0.0
    %180 = vmatprep.subr.mxu0 0.0
    %181 = vmatpush2.xpose.msra.mxu0 0.0
    %182 = vmatprep.subr.mxu0 0.0
    %183 = vmatpush2.xpose.msra.mxu0 0.0
    %184 = vmatprep.subr.mxu0 0.0
    %185 = vmatpush2.xpose.msra.mxu0 0.0
    %186 = vmatprep.subr.mxu0 0.0
    %187 = vmatpush2.xpose.msra.mxu0 0.0
    %188 = vmatprep.subr.mxu0 0.0
    %189 = vmatpush2.xpose.msra.mxu0 0.0
    %190 = vmatprep.subr.mxu0 0.0
    %191 = vmatpush2.xpose.msra.mxu0 0.0
    %192 = vmatprep.mubr.f32.mxu0 0.0
    %193 = vmatmul.mubr.f32.gmra.mxu0 %v123
    %v194 = vpop.f32.mrf.mxu0
    %v195 = vadd.f32 %v121, %v194
    %v196 = vpop.f32.mrf.mxu0
    %197 = vdwg.mxu0
    %v198 = vand.u32 2147483647, %v195
    %v199 = vsub.f32 0.0, %v198
    %v200 = vmul.f32 %v199, 1.442695
    %v201 = vpow.pop %v200
    %v202 = vadd.f32 %v201, 1.0
    %v203 = vrcp.pop %v202
    %vm204 = vcmp.ge.f32.partialorder %v195, 0.0
    %v205 = vmul.f32 %v201, %v203
    %v206 = vsel %vm204, %v203, %v205
    %vm207 = vcmask 57344
    %208 = vst.msk [vmem:[#allocation8] sm:$0x1] %vm207, %v206
    // Predicated region
    $region30: #{tpu_custom_call.1} parent=1 // pred_check
      _
    $region31: #{tpu_custom_call.1} parent=1 // pred_check_branch
      %210 = sbr.rel (0) target = $region33
    $region32: #{tpu_custom_call.1} parent=1 // pred_region
      %s212 = ssub.s32 16, 16
      %213 = vsyncadd [#allocation5], %s212
      %s215 = sshll.u32 [#allocation8], 4
      %s216 = int_to_ptr.vmem [resolvable:$true] %s215
      %218 = dma.vmem_to_hbm [thread:$0]  %s216, 16, %s5, [#allocation5]
    $region33: #{tpu_custom_call.1} parent=1 // pred_fallthru
      _
    // Predicated region
    $region34: #{tpu_custom_call.1} parent=1 // pred_check
      _
    $region35: #{tpu_custom_call.1} parent=1 // pred_check_branch
      %220 = sbr.rel (0) target = $region37
    $region36: #{tpu_custom_call.1} parent=1 // pred_region
      %221 = dma.done [#allocation5], 16
    $region37: #{tpu_custom_call.1} parent=1 // pred_fallthru
      _
    %222 = vsyncpa [#allocation4], 1
    %223 = vsyncpa [#allocation7], 1
    %224 = vsyncpa [#allocation5], 1

</llo_original>
